<compile_context>
chip_gen: v6e
topology: v6e:2x2x1
jax: 0.10.0
libtpu: 0.0.40
codegen_flags: <defaults>
</compile_context>

<pallas_src>
import functools

import jax
import jax.numpy as jnp
from jax.experimental import pallas as pl
from jax.experimental.pallas import tpu as pltpu


def _mlp_fused_kernel(x_ref, *refs, num_layers: int):
    """Fused forward pass of the whole MLP.

    refs = (w0, b0, w1, b1, ..., w_{L}, b_{L}, o_ref).
    ReLU after every layer except the last (the 10-unit head, padded to 128 lanes).
    """
    o_ref = refs[-1]
    wb_refs = refs[:-1]

    h = x_ref[...]                                   # [B, F_in], f32, lives in vregs
    for i in range(num_layers):
        w = wb_refs[2 * i][...]                      # [F_in, F_out]
        b = wb_refs[2 * i + 1][...]                  # [1, F_out] -> broadcast over batch
        h = jnp.dot(h, w, preferred_element_type=jnp.float32) + b
        if i < num_layers - 1:
            h = jnp.maximum(h, 0.0)                  # activation() == nn.ReLU
    o_ref[...] = h                                   # single full-tile (lane-dense) store


def neural_net_forward(params, x):
    """Forward pass of the whole MLP in a single pallas_call.

    params: list of (w, b), w: [F_in, F_out] f32, b: [1, F_out] f32.
    x: [B, F_in] f32.  Returns [B, F_out_last] f32.
    """
    B = x.shape[0]
    num_layers = len(params)
    out_dim = params[-1][0].shape[1]
    # Lane-dense output: round the stored output width up to a multiple of 128.
    out_pad = max(128, ((out_dim + 127) // 128) * 128)
    pad = out_pad - out_dim

    flat_inputs = []
    for i, (w, b) in enumerate(params):
        if i == num_layers - 1 and pad > 0:
            # Zero-pad the head so the output store is a full 128-lane tile.
            w = jnp.pad(w, ((0, 0), (0, pad)))
            b = jnp.pad(b, ((0, 0), (0, pad)))
        flat_inputs.append(w)
        flat_inputs.append(b)

    vmem_spec = pl.BlockSpec(memory_space=pltpu.MemorySpace.VMEM)
    kernel = functools.partial(_mlp_fused_kernel, num_layers=num_layers)

    y_padded = pl.pallas_call(
        kernel,
        out_shape=jax.ShapeDtypeStruct((B, out_pad), jnp.float32),
        in_specs=[vmem_spec] * (1 + len(flat_inputs)),
        out_specs=vmem_spec,
    )(x, *flat_inputs)

    return y_padded[:, :out_dim]


def init_neural_net_params(key, input_size, num_layers, num_nodes, out_size=10):
    """Deterministic parameter init mirroring the nn.Sequential structure.

    Returns a list of (w, b) with w: [F_in, F_out], b: [1, F_out].
    """
    dims = [input_size] + [num_nodes] * num_layers + [out_size]
    params = []
    for i in range(len(dims) - 1):
        key, kw, kb = jax.random.split(key, 3)
        fan_in = dims[i]
        bound = 1.0 / jnp.sqrt(jnp.float32(fan_in))  # PyTorch default uniform bound
        w = jax.random.uniform(kw, (dims[i], dims[i + 1]), jnp.float32, -bound, bound)
        b = jax.random.uniform(kb, (1, dims[i + 1]), jnp.float32, -bound, bound)
        params.append((w, b))
    return params


if __name__ == "__main__":
    # Small shapes consistent with the module: input_size=32, num_layers=3,
    # num_nodes=64, activation=nn.ReLU, batch=8.
    input_size, num_layers, num_nodes = 32, 3, 64
    batch = 8

    key = jax.random.PRNGKey(0)
    key, kx = jax.random.split(key)
    x = jax.random.normal(kx, (batch, input_size), jnp.float32)

    params = init_neural_net_params(key, input_size, num_layers, num_nodes)

    fwd = jax.jit(neural_net_forward)
    out = fwd(params, x)
    out = jax.block_until_ready(out)

    assert out.shape == (batch, 10), out.shape

    # Pure-JAX reference check (ReLU after every layer except the last).
    ref = x
    for i, (w, b) in enumerate(params):
        ref = ref @ w + b
        if i < len(params) - 1:
            ref = jnp.maximum(ref, 0.0)
    assert jnp.allclose(out, ref, atol=1e-5, rtol=1e-5)

    print("KERNEL_OK")
</pallas_src>

<mosaic_0001>
module attributes {stable_mosaic.version = 11 : i64} {
  func.func @_mlp_fused_kernel(%arg0: memref<8x32xf32, #tpu.memory_space<vmem>>, %arg1: memref<32x64xf32, #tpu.memory_space<vmem>>, %arg2: memref<1x64xf32, #tpu.memory_space<vmem>>, %arg3: memref<64x64xf32, #tpu.memory_space<vmem>>, %arg4: memref<1x64xf32, #tpu.memory_space<vmem>>, %arg5: memref<64x64xf32, #tpu.memory_space<vmem>>, %arg6: memref<1x64xf32, #tpu.memory_space<vmem>>, %arg7: memref<64x128xf32, #tpu.memory_space<vmem>>, %arg8: memref<1x128xf32, #tpu.memory_space<vmem>>, %arg9: memref<8x128xf32, #tpu.memory_space<vmem>>) attributes {dimension_semantics = [], scalar_prefetch = 0 : i64, scratch_operands = 0 : i64, tpu.core_type = #tpu.core_type<tc>} {
    %c0 = arith.constant 0 : index
    %c0_0 = arith.constant 0 : index
    %0 = vector.load %arg0[%c0, %c0_0] : memref<8x32xf32, #tpu.memory_space<vmem>>, vector<8x32xf32>
    %c0_1 = arith.constant 0 : index
    %c0_2 = arith.constant 0 : index
    %1 = vector.load %arg1[%c0_1, %c0_2] : memref<32x64xf32, #tpu.memory_space<vmem>>, vector<32x64xf32>
    %c0_3 = arith.constant 0 : index
    %c0_4 = arith.constant 0 : index
    %2 = vector.load %arg2[%c0_3, %c0_4] : memref<1x64xf32, #tpu.memory_space<vmem>>, vector<1x64xf32>
    %cst = arith.constant dense<0.000000e+00> : vector<8x64xf32>
    %3 = tpu.matmul %0, %1, %cst {dimension_numbers = #tpu.dot_dimension_numbers<[1], [0], [0], [1], [0, 0, 1, 1], [], []>} : vector<8x32xf32>, vector<32x64xf32>, vector<8x64xf32> -> vector<8x64xf32>
    %4 = vector.broadcast %2 : vector<1x64xf32> to vector<8x64xf32>
    %5 = arith.addf %3, %4 : vector<8x64xf32>
    %cst_5 = arith.constant 0.000000e+00 : f32
    %6 = vector.broadcast %cst_5 : f32 to vector<8x64xf32>
    %7 = arith.maximumf %5, %6 : vector<8x64xf32>
    %c0_6 = arith.constant 0 : index
    %c0_7 = arith.constant 0 : index
    %8 = vector.load %arg3[%c0_6, %c0_7] : memref<64x64xf32, #tpu.memory_space<vmem>>, vector<64x64xf32>
    %c0_8 = arith.constant 0 : index
    %c0_9 = arith.constant 0 : index
    %9 = vector.load %arg4[%c0_8, %c0_9] : memref<1x64xf32, #tpu.memory_space<vmem>>, vector<1x64xf32>
    %cst_10 = arith.constant dense<0.000000e+00> : vector<8x64xf32>
    %10 = tpu.matmul %7, %8, %cst_10 {dimension_numbers = #tpu.dot_dimension_numbers<[1], [0], [0], [1], [0, 0, 1, 1], [], []>} : vector<8x64xf32>, vector<64x64xf32>, vector<8x64xf32> -> vector<8x64xf32>
    %11 = vector.broadcast %9 : vector<1x64xf32> to vector<8x64xf32>
    %12 = arith.addf %10, %11 : vector<8x64xf32>
    %cst_11 = arith.constant 0.000000e+00 : f32
    %13 = vector.broadcast %cst_11 : f32 to vector<8x64xf32>
    %14 = arith.maximumf %12, %13 : vector<8x64xf32>
    %c0_12 = arith.constant 0 : index
    %c0_13 = arith.constant 0 : index
    %15 = vector.load %arg5[%c0_12, %c0_13] : memref<64x64xf32, #tpu.memory_space<vmem>>, vector<64x64xf32>
    %c0_14 = arith.constant 0 : index
    %c0_15 = arith.constant 0 : index
    %16 = vector.load %arg6[%c0_14, %c0_15] : memref<1x64xf32, #tpu.memory_space<vmem>>, vector<1x64xf32>
    %cst_16 = arith.constant dense<0.000000e+00> : vector<8x64xf32>
    %17 = tpu.matmul %14, %15, %cst_16 {dimension_numbers = #tpu.dot_dimension_numbers<[1], [0], [0], [1], [0, 0, 1, 1], [], []>} : vector<8x64xf32>, vector<64x64xf32>, vector<8x64xf32> -> vector<8x64xf32>
    %18 = vector.broadcast %16 : vector<1x64xf32> to vector<8x64xf32>
    %19 = arith.addf %17, %18 : vector<8x64xf32>
    %cst_17 = arith.constant 0.000000e+00 : f32
    %20 = vector.broadcast %cst_17 : f32 to vector<8x64xf32>
    %21 = arith.maximumf %19, %20 : vector<8x64xf32>
    %c0_18 = arith.constant 0 : index
    %c0_19 = arith.constant 0 : index
    %22 = vector.load %arg7[%c0_18, %c0_19] : memref<64x128xf32, #tpu.memory_space<vmem>>, vector<64x128xf32>
    %c0_20 = arith.constant 0 : index
    %c0_21 = arith.constant 0 : index
    %23 = vector.load %arg8[%c0_20, %c0_21] : memref<1x128xf32, #tpu.memory_space<vmem>>, vector<1x128xf32>
    %cst_22 = arith.constant dense<0.000000e+00> : vector<8x128xf32>
    %24 = tpu.matmul %21, %22, %cst_22 {dimension_numbers = #tpu.dot_dimension_numbers<[1], [0], [0], [1], [0, 0, 1, 1], [], []>} : vector<8x64xf32>, vector<64x128xf32>, vector<8x128xf32> -> vector<8x128xf32>
    %25 = vector.broadcast %23 : vector<1x128xf32> to vector<8x128xf32>
    %26 = arith.addf %24, %25 : vector<8x128xf32>
    %c0_23 = arith.constant 0 : index
    %c0_24 = arith.constant 0 : index
    %27 = vector.load %arg9[%c0_23, %c0_24] : memref<8x128xf32, #tpu.memory_space<vmem>>, vector<8x128xf32>
    tpu.vector_store %arg9[%c0_23, %c0_24], %26 {strides = array<i32>} : memref<8x128xf32, #tpu.memory_space<vmem>>, vector<8x128xf32>,
    return
  }
}

</mosaic_0001>

<llo_original>
// kernel: neural_net_forward.1
$region0: #{neural_net_forward.1}
  #allocation0 [shape = 'u32[]', space=smem, size = 0x4, offset = 0x4, fixed_abs, tag = 'smem constant byte address 0x4 - core index']
  #allocation1 [shape = 'u32[144,128]{1,0:T(1,128)}', space=vmem, size = 0x12000, scoped, tag = 'internal scratch']
  %s0 = inlined_call_operand.vmem [shape: f32[8,32], index: 0, kind: input, shape index: {}]
  %s1 = inlined_call_operand.vmem [shape: f32[32,64], index: 1, kind: input, shape index: {}]
  %s2 = inlined_call_operand.vmem [shape: f32[1,64], index: 2, kind: input, shape index: {}]
  %s3 = inlined_call_operand.vmem [shape: f32[64,64], index: 3, kind: input, shape index: {}]
  %s4 = inlined_call_operand.vmem [shape: f32[1,64], index: 4, kind: input, shape index: {}]
  %s5 = inlined_call_operand.vmem [shape: f32[64,64], index: 5, kind: input, shape index: {}]
  %s6 = inlined_call_operand.vmem [shape: f32[1,64], index: 6, kind: input, shape index: {}]
  %s7 = inlined_call_operand.vmem [shape: f32[64,128], index: 7, kind: input, shape index: {}]
  %s8 = inlined_call_operand.vmem [shape: f32[1,128], index: 8, kind: input, shape index: {}]
  %s9 = inlined_call_operand.hbm [shape: f32[8,128], index: 9, kind: output, shape index: {}]
  %s10 = sld [smem:[#allocation0]]
  $region46: #{neural_net_forward.1} parent=0
    _
  %s12 = ssub.s32 1, %s10
  %s13 = scalar_select 0, %s12, %s10
  $region1: #{neural_net_forward.1} parent=0
    #allocation2 [shape = 'u8[4096]{0}', space=vmem, size = 0x1000, scoped, tag = 'output window, operand 0, single buffered']
    #allocation3 [shape = 's32[1]{0}', space=sflag, size = 0x4, scoped, tag = 'scoped memory for neural_net_forward.1']
    %14 = vsyncpa [#allocation3], 0
    // Predicated region
    $region2: #{neural_net_forward.1} parent=1 // pred_check
      _
    $region3: #{neural_net_forward.1} parent=1 // pred_check_branch
      %16 = sbr.rel (0) target = $region5
    $region4: #{neural_net_forward.1} parent=1 // pred_region
      _
    $region5: #{neural_net_forward.1} parent=1 // pred_fallthru
      _
    // Predicated region
    $region6: #{neural_net_forward.1} parent=1 // pred_check
      _
    $region7: #{neural_net_forward.1} parent=1 // pred_check_branch
      %18 = sbr.rel (0) target = $region9
    $region8: #{neural_net_forward.1} parent=1 // pred_region
      _
    $region9: #{neural_net_forward.1} parent=1 // pred_fallthru
      _
    // Predicated region
    $region10: #{neural_net_forward.1} parent=1 // pred_check
      _
    $region11: #{neural_net_forward.1} parent=1 // pred_check_branch
      %20 = sbr.rel (0) target = $region13
    $region12: #{neural_net_forward.1} parent=1 // pred_region
      _
    $region13: #{neural_net_forward.1} parent=1 // pred_fallthru
      _
    // Predicated region
    $region14: #{neural_net_forward.1} parent=1 // pred_check
      _
    $region15: #{neural_net_forward.1} parent=1 // pred_check_branch
      %22 = sbr.rel (0) target = $region17
    $region16: #{neural_net_forward.1} parent=1 // pred_region
      _
    $region17: #{neural_net_forward.1} parent=1 // pred_fallthru
      _
    // Predicated region
    $region18: #{neural_net_forward.1} parent=1 // pred_check
      _
    $region19: #{neural_net_forward.1} parent=1 // pred_check_branch
      %24 = sbr.rel (0) target = $region21
    $region20: #{neural_net_forward.1} parent=1 // pred_region
      _
    $region21: #{neural_net_forward.1} parent=1 // pred_fallthru
      _
    // Predicated region
    $region22: #{neural_net_forward.1} parent=1 // pred_check
      _
    $region23: #{neural_net_forward.1} parent=1 // pred_check_branch
      %26 = sbr.rel (0) target = $region25
    $region24: #{neural_net_forward.1} parent=1 // pred_region
      _
    $region25: #{neural_net_forward.1} parent=1 // pred_fallthru
      _
    // Predicated region
    $region26: #{neural_net_forward.1} parent=1 // pred_check
      _
    $region27: #{neural_net_forward.1} parent=1 // pred_check_branch
      %28 = sbr.rel (0) target = $region29
    $region28: #{neural_net_forward.1} parent=1 // pred_region
      _
    $region29: #{neural_net_forward.1} parent=1 // pred_fallthru
      _
    // Predicated region
    $region30: #{neural_net_forward.1} parent=1 // pred_check
      _
    $region31: #{neural_net_forward.1} parent=1 // pred_check_branch
      %30 = sbr.rel (0) target = $region33
    $region32: #{neural_net_forward.1} parent=1 // pred_region
      _
    $region33: #{neural_net_forward.1} parent=1 // pred_fallthru
      _
    // Predicated region
    $region34: #{neural_net_forward.1} parent=1 // pred_check
      _
    $region35: #{neural_net_forward.1} parent=1 // pred_check_branch
      %32 = sbr.rel (0) target = $region37
    $region36: #{neural_net_forward.1} parent=1 // pred_region
      _
    $region37: #{neural_net_forward.1} parent=1 // pred_fallthru
      _
    %v33 = vld [vmem:[%s0] sm:$0xff]
    %v34 = vld [vmem:[%s1] sm:$0xff]
    %v35 = vld [vmem:[%s1 + $0x8] sm:$0xff]
    %v36 = vld [vmem:[%s1 + $0x10] sm:$0xff]
    %v37 = vld [vmem:[%s1 + $0x18] sm:$0xff]
    %v38 = vld [vmem:[%s2] sm:$0x1]
    %v40 = vlaneseq
    %v41 = vshrl.u32 %v40, 7
    %v42 = vsub.s32 0, %v41
    %v43 = vrot.slane %v38, %v42
    %vm45 = vcmask 261120
    %v47 = vsel %vm45, %v33, 0
    %49 = vmatprep.subr.mxu0 0.0
    %50 = vmatpush1.msra.mxu0 0.0
    %51 = vmatprep.subr.mxu0 0.0
    %52 = vmatpush1.msra.mxu0 0.0
    %53 = vmatprep.subr.mxu0 0.0
    %54 = vmatpush1.msra.mxu0 0.0
    %55 = vmatprep.subr.mxu0 0.0
    %56 = vmatpush1.msra.mxu0 0.0
    %57 = vmatprep.subr.mxu0 0.0
    %58 = vmatpush1.msra.mxu0 0.0
    %59 = vmatprep.subr.mxu0 0.0
    %60 = vmatpush1.msra.mxu0 0.0
    %61 = vmatprep.subr.mxu0 0.0
    %62 = vmatpush1.msra.mxu0 0.0
    %63 = vmatprep.subr.mxu0 0.0
    %64 = vmatpush1.msra.mxu0 0.0
    %65 = vmatprep.subr.mxu0 0.0
    %66 = vmatpush1.msra.mxu0 0.0
    %67 = vmatprep.subr.mxu0 0.0
    %68 = vmatpush1.msra.mxu0 0.0
    %69 = vmatprep.subr.mxu0 0.0
    %70 = vmatpush1.msra.mxu0 0.0
    %71 = vmatprep.subr.mxu0 0.0
    %72 = vmatpush1.msra.mxu0 0.0
    %73 = vmatprep.subr.mxu0 0.0
    %74 = vmatpush1.msra.mxu0 %v37
    %75 = vmatprep.subr.mxu0 0.0
    %76 = vmatpush1.msra.mxu0 %v36
    %77 = vmatprep.subr.mxu0 0.0
    %78 = vmatpush1.msra.mxu0 %v35
    %79 = vmatprep.subr.mxu0 0.0
    %80 = vmatpush1.msra.mxu0 %v34
    %81 = vmatprep.subr.mxu0 0.0
    %82 = vmatpush2.msra.mxu0 0.0
    %83 = vmatprep.subr.mxu0 0.0
    %84 = vmatpush2.msra.mxu0 0.0
    %85 = vmatprep.subr.mxu0 0.0
    %86 = vmatpush2.msra.mxu0 0.0
    %87 = vmatprep.subr.mxu0 0.0
    %88 = vmatpush2.msra.mxu0 0.0
    %89 = vmatprep.subr.mxu0 0.0
    %90 = vmatpush2.msra.mxu0 0.0
    %91 = vmatprep.subr.mxu0 0.0
    %92 = vmatpush2.msra.mxu0 0.0
    %93 = vmatprep.subr.mxu0 0.0
    %94 = vmatpush2.msra.mxu0 0.0
    %95 = vmatprep.subr.mxu0 0.0
    %96 = vmatpush2.msra.mxu0 0.0
    %97 = vmatprep.subr.mxu0 0.0
    %98 = vmatpush2.msra.mxu0 0.0
    %99 = vmatprep.subr.mxu0 0.0
    %100 = vmatpush2.msra.mxu0 0.0
    %101 = vmatprep.subr.mxu0 0.0
    %102 = vmatpush2.msra.mxu0 0.0
    %103 = vmatprep.subr.mxu0 0.0
    %104 = vmatpush2.msra.mxu0 0.0
    %105 = vmatprep.subr.mxu0 0.0
    %106 = vmatpush2.msra.mxu0 0.0
    %107 = vmatprep.subr.mxu0 0.0
    %108 = vmatpush2.msra.mxu0 0.0
    %109 = vmatprep.subr.mxu0 0.0
    %110 = vmatpush2.msra.mxu0 0.0
    %111 = vmatprep.subr.mxu0 0.0
    %112 = vmatpush2.msra.mxu0 0.0
    %113 = vmatprep.mubr.f32.mxu0 0.0
    %114 = vmatmul.mubr.f32.gmra.mxu0 %v47
    %v115 = vpop.f32.mrf.mxu0
    %v116 = vadd.f32 %v43, %v115
    %v117 = vpop.f32.mrf.mxu0
    %118 = vdwg.mxu0
    %v119 = vmax.f32 %v116, 0.0
    %v120 = vld [vmem:[%s3] sm:$0xff]
    %v121 = vld [vmem:[%s3 + $0x8] sm:$0xff]
    %v122 = vld [vmem:[%s3 + $0x10] sm:$0xff]
    %v123 = vld [vmem:[%s3 + $0x18] sm:$0xff]
    %v124 = vld [vmem:[%s3 + $0x20] sm:$0xff]
    %v125 = vld [vmem:[%s3 + $0x28] sm:$0xff]
    %v126 = vld [vmem:[%s3 + $0x30] sm:$0xff]
    %v127 = vld [vmem:[%s3 + $0x38] sm:$0xff]
    %v128 = vld [vmem:[%s4] sm:$0x1]
    %v130 = vlaneseq
    %v131 = vshrl.u32 %v130, 7
    %v132 = vsub.s32 0, %v131
    %v133 = vrot.slane %v128, %v132
    %vm135 = vcmask 523264
    %v137 = vsel %vm135, %v119, 0
    %139 = vmatprep.subr.mxu0 0.0
    %140 = vmatpush1.msra.mxu0 0.0
    %141 = vmatprep.subr.mxu0 0.0
    %142 = vmatpush1.msra.mxu0 0.0
    %143 = vmatprep.subr.mxu0 0.0
    %144 = vmatpush1.msra.mxu0 0.0
    %145 = vmatprep.subr.mxu0 0.0
    %146 = vmatpush1.msra.mxu0 0.0
    %147 = vmatprep.subr.mxu0 0.0
    %148 = vmatpush1.msra.mxu0 0.0
    %149 = vmatprep.subr.mxu0 0.0
    %150 = vmatpush1.msra.mxu0 0.0
    %151 = vmatprep.subr.mxu0 0.0
    %152 = vmatpush1.msra.mxu0 0.0
    %153 = vmatprep.subr.mxu0 0.0
    %154 = vmatpush1.msra.mxu0 0.0
    %155 = vmatprep.subr.mxu0 0.0
    %156 = vmatpush1.msra.mxu0 %v127
    %157 = vmatprep.subr.mxu0 0.0
    %158 = vmatpush1.msra.mxu0 %v126
    %159 = vmatprep.subr.mxu0 0.0
    %160 = vmatpush1.msra.mxu0 %v125
    %161 = vmatprep.subr.mxu0 0.0
    %162 = vmatpush1.msra.mxu0 %v124
    %163 = vmatprep.subr.mxu0 0.0
    %164 = vmatpush1.msra.mxu0 %v123
    %165 = vmatprep.subr.mxu0 0.0
    %166 = vmatpush1.msra.mxu0 %v122
    %167 = vmatprep.subr.mxu0 0.0
    %168 = vmatpush1.msra.mxu0 %v121
    %169 = vmatprep.subr.mxu0 0.0
    %170 = vmatpush1.msra.mxu0 %v120
    %171 = vmatprep.subr.mxu0 0.0
    %172 = vmatpush2.msra.mxu0 0.0
    %173 = vmatprep.subr.mxu0 0.0
    %174 = vmatpush2.msra.mxu0 0.0
    %175 = vmatprep.subr.mxu0 0.0
    %176 = vmatpush2.msra.mxu0 0.0
    %177 = vmatprep.subr.mxu0 0.0
    %178 = vmatpush2.msra.mxu0 0.0
    %179 = vmatprep.subr.mxu0 0.0
    %180 = vmatpush2.msra.mxu0 0.0
    %181 = vmatprep.subr.mxu0 0.0
    %182 = vmatpush2.msra.mxu0 0.0
    %183 = vmatprep.subr.mxu0 0.0
    %184 = vmatpush2.msra.mxu0 0.0
    %185 = vmatprep.subr.mxu0 0.0
    %186 = vmatpush2.msra.mxu0 0.0
    %187 = vmatprep.subr.mxu0 0.0
    %188 = vmatpush2.msra.mxu0 0.0
    %189 = vmatprep.subr.mxu0 0.0
    %190 = vmatpush2.msra.mxu0 0.0
    %191 = vmatprep.subr.mxu0 0.0
    %192 = vmatpush2.msra.mxu0 0.0
    %193 = vmatprep.subr.mxu0 0.0
    %194 = vmatpush2.msra.mxu0 0.0
    %195 = vmatprep.subr.mxu0 0.0
    %196 = vmatpush2.msra.mxu0 0.0
    %197 = vmatprep.subr.mxu0 0.0
    %198 = vmatpush2.msra.mxu0 0.0
    %199 = vmatprep.subr.mxu0 0.0
    %200 = vmatpush2.msra.mxu0 0.0
    %201 = vmatprep.subr.mxu0 0.0
    %202 = vmatpush2.msra.mxu0 0.0
    %203 = vmatprep.mubr.f32.mxu0 0.0
    %204 = vmatmul.mubr.f32.gmra.mxu0 %v137
    %v205 = vpop.f32.mrf.mxu0
    %v206 = vadd.f32 %v133, %v205
    %v207 = vpop.f32.mrf.mxu0
    %208 = vdwg.mxu0
    %v209 = vmax.f32 %v206, 0.0
    %v210 = vld [vmem:[%s5] sm:$0xff]
    %v211 = vld [vmem:[%s5 + $0x8] sm:$0xff]
    %v212 = vld [vmem:[%s5 + $0x10] sm:$0xff]
    %v213 = vld [vmem:[%s5 + $0x18] sm:$0xff]
    %v214 = vld [vmem:[%s5 + $0x20] sm:$0xff]
    %v215 = vld [vmem:[%s5 + $0x28] sm:$0xff]
    %v216 = vld [vmem:[%s5 + $0x30] sm:$0xff]
    %v217 = vld [vmem:[%s5 + $0x38] sm:$0xff]
    %v218 = vld [vmem:[%s6] sm:$0x1]
    %v220 = vlaneseq
    %v221 = vshrl.u32 %v220, 7
    %v222 = vsub.s32 0, %v221
    %v223 = vrot.slane %v218, %v222
    %v226 = vsel %vm135, %v209, 0
    %228 = vmatprep.subr.mxu0 0.0
    %229 = vmatpush1.msra.mxu0 0.0
    %230 = vmatprep.subr.mxu0 0.0
    %231 = vmatpush1.msra.mxu0 0.0
    %232 = vmatprep.subr.mxu0 0.0
    %233 = vmatpush1.msra.mxu0 0.0
    %234 = vmatprep.subr.mxu0 0.0
    %235 = vmatpush1.msra.mxu0 0.0
    %236 = vmatprep.subr.mxu0 0.0
    %237 = vmatpush1.msra.mxu0 0.0
    %238 = vmatprep.subr.mxu0 0.0
    %239 = vmatpush1.msra.mxu0 0.0
    %240 = vmatprep.subr.mxu0 0.0
    %241 = vmatpush1.msra.mxu0 0.0
    %242 = vmatprep.subr.mxu0 0.0
    %243 = vmatpush1.msra.mxu0 0.0
    %244 = vmatprep.subr.mxu0 0.0
    %245 = vmatpush1.msra.mxu0 %v217
    %246 = vmatprep.subr.mxu0 0.0
    %247 = vmatpush1.msra.mxu0 %v216
    %248 = vmatprep.subr.mxu0 0.0
    %249 = vmatpush1.msra.mxu0 %v215
    %250 = vmatprep.subr.mxu0 0.0
    %251 = vmatpush1.msra.mxu0 %v214
    %252 = vmatprep.subr.mxu0 0.0
    %253 = vmatpush1.msra.mxu0 %v213
    %254 = vmatprep.subr.mxu0 0.0
    %255 = vmatpush1.msra.mxu0 %v212
    %256 = vmatprep.subr.mxu0 0.0
    %257 = vmatpush1.msra.mxu0 %v211
    %258 = vmatprep.subr.mxu0 0.0
    %259 = vmatpush1.msra.mxu0 %v210
    %260 = vmatprep.subr.mxu0 0.0
    %261 = vmatpush2.msra.mxu0 0.0
    %262 = vmatprep.subr.mxu0 0.0
    %263 = vmatpush2.msra.mxu0 0.0
    %264 = vmatprep.subr.mxu0 0.0
    %265 = vmatpush2.msra.mxu0 0.0
    %266 = vmatprep.subr.mxu0 0.0
    %267 = vmatpush2.msra.mxu0 0.0
    %268 = vmatprep.subr.mxu0 0.0
    %269 = vmatpush2.msra.mxu0 0.0
    %270 = vmatprep.subr.mxu0 0.0
    %271 = vmatpush2.msra.mxu0 0.0
    %272 = vmatprep.subr.mxu0 0.0
    %273 = vmatpush2.msra.mxu0 0.0
    %274 = vmatprep.subr.mxu0 0.0
    %275 = vmatpush2.msra.mxu0 0.0
    %276 = vmatprep.subr.mxu0 0.0
    %277 = vmatpush2.msra.mxu0 0.0
    %278 = vmatprep.subr.mxu0 0.0
    %279 = vmatpush2.msra.mxu0 0.0
    %280 = vmatprep.subr.mxu0 0.0
    %281 = vmatpush2.msra.mxu0 0.0
    %282 = vmatprep.subr.mxu0 0.0
    %283 = vmatpush2.msra.mxu0 0.0
    %284 = vmatprep.subr.mxu0 0.0
    %285 = vmatpush2.msra.mxu0 0.0
    %286 = vmatprep.subr.mxu0 0.0
    %287 = vmatpush2.msra.mxu0 0.0
    %288 = vmatprep.subr.mxu0 0.0
    %289 = vmatpush2.msra.mxu0 0.0
    %290 = vmatprep.subr.mxu0 0.0
    %291 = vmatpush2.msra.mxu0 0.0
    %292 = vmatprep.mubr.f32.mxu0 0.0
    %293 = vmatmul.mubr.f32.gmra.mxu0 %v226
    %v294 = vpop.f32.mrf.mxu0
    %v295 = vadd.f32 %v223, %v294
    %v296 = vpop.f32.mrf.mxu0
    %297 = vdwg.mxu0
    %v298 = vmax.f32 %v295, 0.0
    %v299 = vld [vmem:[%s7] sm:$0xff]
    %v300 = vld [vmem:[%s7 + $0x8] sm:$0xff]
    %v301 = vld [vmem:[%s7 + $0x10] sm:$0xff]
    %v302 = vld [vmem:[%s7 + $0x18] sm:$0xff]
    %v303 = vld [vmem:[%s7 + $0x20] sm:$0xff]
    %v304 = vld [vmem:[%s7 + $0x28] sm:$0xff]
    %v305 = vld [vmem:[%s7 + $0x30] sm:$0xff]
    %v306 = vld [vmem:[%s7 + $0x38] sm:$0xff]
    %v307 = vld [vmem:[%s8] sm:$0x1]
    %v309 = vlaneseq
    %v310 = vshrl.u32 %v309, 7
    %v311 = vsub.s32 0, %v310
    %v312 = vrot.slane %v307, %v311
    %v315 = vsel %vm135, %v298, 0
    %317 = vmatprep.subr.mxu0 0.0
    %318 = vmatpush1.msra.mxu0 0.0
    %319 = vmatprep.subr.mxu0 0.0
    %320 = vmatpush1.msra.mxu0 0.0
    %321 = vmatprep.subr.mxu0 0.0
    %322 = vmatpush1.msra.mxu0 0.0
    %323 = vmatprep.subr.mxu0 0.0
    %324 = vmatpush1.msra.mxu0 0.0
    %325 = vmatprep.subr.mxu0 0.0
    %326 = vmatpush1.msra.mxu0 0.0
    %327 = vmatprep.subr.mxu0 0.0
    %328 = vmatpush1.msra.mxu0 0.0
    %329 = vmatprep.subr.mxu0 0.0
    %330 = vmatpush1.msra.mxu0 0.0
    %331 = vmatprep.subr.mxu0 0.0
    %332 = vmatpush1.msra.mxu0 0.0
    %333 = vmatprep.subr.mxu0 0.0
    %334 = vmatpush1.msra.mxu0 %v306
    %335 = vmatprep.subr.mxu0 0.0
    %336 = vmatpush1.msra.mxu0 %v305
    %337 = vmatprep.subr.mxu0 0.0
    %338 = vmatpush1.msra.mxu0 %v304
    %339 = vmatprep.subr.mxu0 0.0
    %340 = vmatpush1.msra.mxu0 %v303
    %341 = vmatprep.subr.mxu0 0.0
    %342 = vmatpush1.msra.mxu0 %v302
    %343 = vmatprep.subr.mxu0 0.0
    %344 = vmatpush1.msra.mxu0 %v301
    %345 = vmatprep.subr.mxu0 0.0
    %346 = vmatpush1.msra.mxu0 %v300
    %347 = vmatprep.subr.mxu0 0.0
    %348 = vmatpush1.msra.mxu0 %v299
    %349 = vmatprep.subr.mxu0 0.0
    %350 = vmatpush2.msra.mxu0 0.0
    %351 = vmatprep.subr.mxu0 0.0
    %352 = vmatpush2.msra.mxu0 0.0
    %353 = vmatprep.subr.mxu0 0.0
    %354 = vmatpush2.msra.mxu0 0.0
    %355 = vmatprep.subr.mxu0 0.0
    %356 = vmatpush2.msra.mxu0 0.0
    %357 = vmatprep.subr.mxu0 0.0
    %358 = vmatpush2.msra.mxu0 0.0
    %359 = vmatprep.subr.mxu0 0.0
    %360 = vmatpush2.msra.mxu0 0.0
    %361 = vmatprep.subr.mxu0 0.0
    %362 = vmatpush2.msra.mxu0 0.0
    %363 = vmatprep.subr.mxu0 0.0
    %364 = vmatpush2.msra.mxu0 0.0
    %365 = vmatprep.subr.mxu0 0.0
    %366 = vmatpush2.msra.mxu0 0.0
    %367 = vmatprep.subr.mxu0 0.0
    %368 = vmatpush2.msra.mxu0 0.0
    %369 = vmatprep.subr.mxu0 0.0
    %370 = vmatpush2.msra.mxu0 0.0
    %371 = vmatprep.subr.mxu0 0.0
    %372 = vmatpush2.msra.mxu0 0.0
    %373 = vmatprep.subr.mxu0 0.0
    %374 = vmatpush2.msra.mxu0 0.0
    %375 = vmatprep.subr.mxu0 0.0
    %376 = vmatpush2.msra.mxu0 0.0
    %377 = vmatprep.subr.mxu0 0.0
    %378 = vmatpush2.msra.mxu0 0.0
    %379 = vmatprep.subr.mxu0 0.0
    %380 = vmatpush2.msra.mxu0 0.0
    %381 = vmatprep.mubr.f32.mxu0 0.0
    %382 = vmatmul.mubr.f32.gmra.mxu0 %v315
    %v383 = vpop.f32.mrf.mxu0
    %v384 = vadd.f32 %v312, %v383
    %v385 = vpop.f32.mrf.mxu0
    %386 = vdwg.mxu0
    %387 = vst [vmem:[#allocation2] sm:$0xff] %v384
    // Predicated region
    $region38: #{neural_net_forward.1} parent=1 // pred_check
      _
    $region39: #{neural_net_forward.1} parent=1 // pred_check_branch
      %389 = sbr.rel (0) target = $region41
    $region40: #{neural_net_forward.1} parent=1 // pred_region
      %s391 = ssub.s32 128, 128
      %392 = vsyncadd [#allocation3], %s391
      %s394 = sshll.u32 [#allocation2], 4
      %s395 = int_to_ptr.vmem [resolvable:$true] %s394
      %397 = dma.vmem_to_hbm [thread:$0]  %s395, 128, %s9, [#allocation3]
    $region41: #{neural_net_forward.1} parent=1 // pred_fallthru
      _
    // Predicated region
    $region42: #{neural_net_forward.1} parent=1 // pred_check
      _
    $region43: #{neural_net_forward.1} parent=1 // pred_check_branch
      %399 = sbr.rel (0) target = $region45
    $region44: #{neural_net_forward.1} parent=1 // pred_region
      %400 = dma.done [#allocation3], 128
    $region45: #{neural_net_forward.1} parent=1 // pred_fallthru
      _
    %401 = vsyncpa [#allocation3], 1

</llo_original>
